<compile_context>
chip_gen: v7x
topology: tpu7x:2x2x1
jax: 0.10.0
libtpu: 0.0.40
codegen_flags: <defaults>
</compile_context>

<pallas_src>
import functools

import jax
import jax.numpy as jnp
import numpy as np
from jax.experimental import pallas as pl
from jax.experimental.pallas import tpu as pltpu


def _rup(x, m):
    return ((x + m - 1) // m) * m


# ----------------------------------------------------------------------------
# Kernel 1: 1x1 conv as a row-tiled matmul, with
#   - optional fused BN-affine + ReLU of the *previous* layer on the input,
#   - fused accumulation of per-output-channel sum / sum-of-squares (BN stats).
# Grid axis is a reduction for the stats outputs -> "arbitrary".
# ----------------------------------------------------------------------------
def _mm_bn_stats_kernel(*refs, m_total, tm, bn_relu_in, mask_rows):
    if bn_relu_in:
        x_ref, w_ref, sc_ref, sh_ref, o_ref, sum_ref, sq_ref = refs
    else:
        x_ref, w_ref, o_ref, sum_ref, sq_ref = refs
    i = pl.program_id(0)

    x = x_ref[...]
    if bn_relu_in:
        # previous layer's BN affine + ReLU folded into this matmul's input
        x = jnp.maximum(x * sc_ref[...] + sh_ref[...], 0.0)
    y = jnp.dot(x.astype(w_ref.dtype), w_ref[...],
                preferred_element_type=jnp.float32)
    if mask_rows:
        # ragged last block: keep garbage rows out of the BN statistics
        rows = i * tm + jax.lax.broadcasted_iota(jnp.int32, (tm, 1), 0)
        y = jnp.where(rows < m_total, y, 0.0)
    o_ref[...] = y

    @pl.when(i == 0)
    def _():
        sum_ref[...] = jnp.zeros_like(sum_ref)
        sq_ref[...] = jnp.zeros_like(sq_ref)

    sum_ref[...] += jnp.sum(y, axis=0, keepdims=True)
    sq_ref[...] += jnp.sum(y * y, axis=0, keepdims=True)


def fused_matmul_stats(x, w, scale=None, shift=None, tm=512):
    """y = [relu(x*scale+shift)] @ w, plus per-column sum and sum-of-squares."""
    M, K = x.shape
    Kw, Np = w.shape
    assert K == Kw
    bn_in = scale is not None
    tm = M if M <= tm else max(8, (tm // 8) * 8)
    mask_rows = (M % tm) != 0

    kernel = functools.partial(_mm_bn_stats_kernel, m_total=M, tm=tm,
                               bn_relu_in=bn_in, mask_rows=mask_rows)
    in_specs = [pl.BlockSpec((tm, K), lambda i: (i, 0)),
                pl.BlockSpec((K, Np), lambda i: (0, 0))]
    args = [x, w]
    if bn_in:
        in_specs += [pl.BlockSpec((1, K), lambda i: (0, 0)),
                     pl.BlockSpec((1, K), lambda i: (0, 0))]
        args += [scale.reshape(1, K), shift.reshape(1, K)]

    y, s, q = pl.pallas_call(
        kernel,
        out_shape=[jax.ShapeDtypeStruct((M, Np), jnp.float32),
                   jax.ShapeDtypeStruct((1, Np), jnp.float32),
                   jax.ShapeDtypeStruct((1, Np), jnp.float32)],
        grid=(pl.cdiv(M, tm),),
        in_specs=in_specs,
        out_specs=[pl.BlockSpec((tm, Np), lambda i: (i, 0)),
                   pl.BlockSpec((1, Np), lambda i: (0, 0)),
                   pl.BlockSpec((1, Np), lambda i: (0, 0))],
        # stats accumulate into one shared block -> keep the axis a reduction
        # (TODO(synk): per-core partial stats would enable megacore sharding)
        compiler_params=pltpu.CompilerParams(
            dimension_semantics=("arbitrary",)),
    )(*args)
    return y, s, q


# ----------------------------------------------------------------------------
# Kernel 2: 3x3 conv (padding=1, stride) as a 9-tap accumulating matmul, with
# BN1+ReLU fused into the input read and BN2 batch stats fused into the
# epilogue.  No im2col slab is materialised in HBM.
# ----------------------------------------------------------------------------
def _pick_row_tile(ho, wo, target_rows=512):
    best = 1
    for t in range(1, ho + 1):
        if ho % t == 0 and t * wo <= target_rows:
            best = t
    return best


def _conv3x3_bn_stats_kernel(xpad_ref, w_ref, sc_ref, sh_ref,
                             o_ref, sum_ref, sq_ref,
                             *, H, W, Wo, th, stride, n_out):
    n = pl.program_id(0)
    hb = pl.program_id(1)
    h0 = hb * th

    @pl.when(jnp.logical_and(n == 0, hb == 0))
    def _():
        sum_ref[...] = jnp.zeros_like(sum_ref)
        sq_ref[...] = jnp.zeros_like(sq_ref)

    sc = sc_ref[...]                      # (1, Kp) BN1 scale
    sh = sh_ref[...]                      # (1, Kp) BN1 shift
    # padded-spatial coordinates of each tap, used to mask the zero halo
    row_p = h0 * stride + stride * jax.lax.broadcasted_iota(
        jnp.int32, (th, Wo, 1), 0)
    col_p = stride * jax.lax.broadcasted_iota(jnp.int32, (th, Wo, 1), 1)

    acc = jnp.zeros((th * Wo, n_out), jnp.float32)
    for kh in range(3):
        for kw in range(3):
            if stride == 1:
                xt = xpad_ref[0, pl.ds(h0 + kh, th), pl.ds(kw, Wo), :]
            else:
                # TODO(synk): stride>1 uses strided in-VMEM slices; only the
                # stride==1 path is exercised by the test below.
                xt = xpad_ref[0, pl.ds(h0 * stride + kh, th, stride),
                              pl.ds(kw, Wo, stride), :]
            xb = jnp.maximum(xt * sc + sh, 0.0)          # fused BN1 + ReLU
            halo = ((row_p + kh == 0) | (row_p + kh == H + 1) |
                    (col_p + kw == 0) | (col_p + kw == W + 1))
            xb = jnp.where(halo, 0.0, xb)                # conv zero padding
            acc = acc + jnp.dot(
                xb.reshape(th * Wo, -1).astype(w_ref.dtype),
                w_ref[kh * 3 + kw],
                preferred_element_type=jnp.float32)

    o_ref[...] = acc.reshape(o_ref.shape)
    sum_ref[...] += jnp.sum(acc, axis=0, keepdims=True)
    sq_ref[...] += jnp.sum(acc * acc, axis=0, keepdims=True)


def conv3x3_bn_stats(x_pad, w9, scale, shift, *, H, W, stride):
    """x_pad: (N, H+2, W+2, Kp) raw conv1 output, zero spatial padding.
    w9: (9, Kp, Np) bf16.  BN1 scale/shift applied to the input on the fly."""
    N, _, _, Kp = x_pad.shape
    Np = w9.shape[-1]
    Ho = (H + 2 - 3) // stride + 1
    Wo = (W + 2 - 3) // stride + 1
    th = _pick_row_tile(Ho, Wo)
    nh = Ho // th

    kernel = functools.partial(_conv3x3_bn_stats_kernel, H=H, W=W, Wo=Wo,
                               th=th, stride=stride, n_out=Np)
    y4, s, q = pl.pallas_call(
        kernel,
        out_shape=[jax.ShapeDtypeStruct((N, Ho, Wo, Np), jnp.float32),
                   jax.ShapeDtypeStruct((1, Np), jnp.float32),
                   jax.ShapeDtypeStruct((1, Np), jnp.float32)],
        grid=(N, nh),
        in_specs=[
            # whole padded sample resident in VMEM; block index only changes
            # with n -> one DMA per sample, no 9x im2col traffic in HBM
            pl.BlockSpec((1, H + 2, W + 2, Kp), lambda n, h: (n, 0, 0, 0)),
            pl.BlockSpec((9, Kp, Np), lambda n, h: (0, 0, 0)),
            pl.BlockSpec((1, Kp), lambda n, h: (0, 0)),
            pl.BlockSpec((1, Kp), lambda n, h: (0, 0)),
        ],
        out_specs=[
            pl.BlockSpec((1, th, Wo, Np), lambda n, h: (n, h, 0, 0)),
            pl.BlockSpec((1, Np), lambda n, h: (0, 0)),
            pl.BlockSpec((1, Np), lambda n, h: (0, 0)),
        ],
        compiler_params=pltpu.CompilerParams(
            dimension_semantics=("arbitrary", "arbitrary")),
    )(x_pad, w9, scale.reshape(1, Kp), shift.reshape(1, Kp))
    return y4.reshape(N * Ho * Wo, Np), s, q, Ho, Wo


# ----------------------------------------------------------------------------
# Kernel 3: fused BN3-apply + (downsample-BN-apply) + residual add + ReLU.
# ----------------------------------------------------------------------------
def _bn_residual_relu_kernel(y_ref, sy_ref, ty_ref, r_ref, sr_ref, tr_ref,
                             o_ref):
    y = y_ref[...] * sy_ref[...] + ty_ref[...]
    r = r_ref[...] * sr_ref[...] + tr_ref[...]
    o_ref[...] = jnp.maximum(y + r, 0.0)


def bn_residual_relu(y, sy, ty, r, sr, tr, tm=512):
    M, Np = y.shape
    tm = M if M <= tm else max(8, (tm // 8) * 8)
    vec = lambda a: a.reshape(1, Np)
    return pl.pallas_call(
        _bn_residual_relu_kernel,
        out_shape=jax.ShapeDtypeStruct((M, Np), jnp.float32),
        grid=(pl.cdiv(M, tm),),
        in_specs=[pl.BlockSpec((tm, Np), lambda i: (i, 0)),
                  pl.BlockSpec((1, Np), lambda i: (0, 0)),
                  pl.BlockSpec((1, Np), lambda i: (0, 0)),
                  pl.BlockSpec((tm, Np), lambda i: (i, 0)),
                  pl.BlockSpec((1, Np), lambda i: (0, 0)),
                  pl.BlockSpec((1, Np), lambda i: (0, 0))],
        out_specs=pl.BlockSpec((tm, Np), lambda i: (i, 0)),
        compiler_params=pltpu.CompilerParams(
            dimension_semantics=("parallel",)),
    )(y, vec(sy), vec(ty), r, vec(sr), vec(tr))


def bn_scale_shift(sum_, sumsq, count, gamma, beta, eps=1e-5):
    """Training-mode BN (biased variance) folded into per-channel scale/shift.
    All statistics are f32."""
    mean = sum_.reshape(-1) / count
    var = jnp.maximum(sumsq.reshape(-1) / count - mean * mean, 0.0)
    scale = gamma * jax.lax.rsqrt(var + eps)
    shift = beta - mean * scale
    return scale, shift


# ----------------------------------------------------------------------------
# Module
# ----------------------------------------------------------------------------
class AnytimeBottleneckWidthDepthPallas:
    expansion = 4

    def __init__(self, inplanes, planes, num_subnets, stride=1,
                 downsample=False, key=None):
        assert planes % num_subnets == 0 and inplanes % num_subnets == 0
        self.stride = stride
        self.num_subnets = num_subnets
        self.inplanes_per_subnet = inplanes // num_subnets
        self.planes_per_subnet = planes // num_subnets
        e = self.expansion
        keys = jax.random.split(key, 8)

        def conv_w(kk, shape):  # deterministic, kaiming-ish scale
            fan_in = shape[1] * shape[2] * shape[3]
            return jax.random.normal(kk, shape, jnp.float32) / jnp.sqrt(fan_in)

        self.conv1_w = conv_w(keys[0], (planes, inplanes, 1, 1))
        self.conv2_w = conv_w(keys[1], (planes, planes, 3, 3))
        self.conv3_w = conv_w(keys[2], (planes * e, planes, 1, 1))
        self.downsample_w = (conv_w(keys[3], (planes * e, inplanes, 1, 1))
                             if downsample else None)

        def bn_params(kk, c):
            kg, kb = jax.random.split(kk)
            return (1.0 + 0.1 * jax.random.normal(kg, (c,), jnp.float32),
                    0.1 * jax.random.normal(kb, (c,), jnp.float32))

        self.bn1 = [bn_params(jax.random.fold_in(keys[4], i),
                              (i + 1) * self.planes_per_subnet)
                    for i in range(num_subnets)]
        self.bn2 = [bn_params(jax.random.fold_in(keys[5], i),
                              (i + 1) * self.planes_per_subnet)
                    for i in range(num_subnets)]
        self.bn3 = [bn_params(jax.random.fold_in(keys[6], i),
                              (i + 1) * e * self.planes_per_subnet)
                    for i in range(num_subnets)]
        self.downsample_bn = ([bn_params(jax.random.fold_in(keys[7], i),
                                         (i + 1) * e * self.planes_per_subnet)
                               for i in range(num_subnets)]
                              if downsample else None)
        self._prep_cache = {}

    # Precompute matmul-ready (K, N)-layout bf16 weights + zero-padded BN
    # params once per subnet index k (feedback: no per-call transposes).
    def _prepared(self, k):
        if k in self._prep_cache:
            return self._prep_cache[k]
        e = self.expansion
        ip = (k + 1) * self.inplanes_per_subnet
        p = (k + 1) * self.planes_per_subnet
        c3 = e * p
        Pp1 = _rup(p, 128)      # lane-dense output width of conv1/conv2
        Pp3 = _rup(c3, 128)     # lane-dense output width of conv3/downsample

        w1 = jnp.pad(self.conv1_w[:p, :ip, 0, 0].T,
                     ((0, 0), (0, Pp1 - p))).astype(jnp.bfloat16)
        w2 = jnp.transpose(self.conv2_w[:p, :p], (2, 3, 1, 0)).reshape(9, p, p)
        w2 = jnp.pad(w2, ((0, 0), (0, Pp1 - p), (0, Pp1 - p))
                     ).astype(jnp.bfloat16)
        w3 = jnp.pad(self.conv3_w[:c3, :p, 0, 0].T,
                     ((0, Pp1 - p), (0, Pp3 - c3))).astype(jnp.bfloat16)

        def pad_bn(params, n):
            g, b = params
            return (jnp.pad(g, (0, n - g.shape[0])),
                    jnp.pad(b, (0, n - b.shape[0])))

        prep = dict(ip=ip, p=p, c3=c3, Pp1=Pp1, Pp3=Pp3, w1=w1, w2=w2, w3=w3,
                    bn1=pad_bn(self.bn1[k], Pp1),
                    bn2=pad_bn(self.bn2[k], Pp1),
                    bn3=pad_bn(self.bn3[k], Pp3))
        if self.downsample_w is not None:
            prep["wd"] = jnp.pad(self.downsample_w[:c3, :ip, 0, 0].T,
                                 ((0, 0), (0, Pp3 - c3))).astype(jnp.bfloat16)
            prep["bnd"] = pad_bn(self.downsample_bn[k], Pp3)
        self._prep_cache[k] = prep
        return prep

    def forward(self, x_nchw, k):
        prep = self._prepared(k)
        ip, c3 = prep["ip"], prep["c3"]
        Pp1, Pp3 = prep["Pp1"], prep["Pp3"]
        N, Cin, H, W = x_nchw.shape
        s = self.stride
        assert Cin == ip, "input must carry (k+1)*inplanes_per_subnet channels"

        x_nhwc = jnp.transpose(x_nchw, (0, 2, 3, 1)).astype(jnp.float32)
        x2d = x_nhwc.reshape(N * H * W, ip)
        M1 = N * H * W

        # conv1 (1x1) + BN1 batch-stats, fused
        y1, s1, q1 = fused_matmul_stats(x2d, prep["w1"])
        sc1, sh1 = bn_scale_shift(s1, q1, M1, *prep["bn1"])

        # conv2 (3x3, pad=1, stride): BN1+ReLU fused into the input read,
        # 9-tap accumulating matmul (no im2col slab), BN2 stats fused
        y1_pad = jnp.pad(y1.reshape(N, H, W, Pp1),
                         ((0, 0), (1, 1), (1, 1), (0, 0)))
        y2, s2, q2, Ho, Wo = conv3x3_bn_stats(y1_pad, prep["w2"], sc1, sh1,
                                              H=H, W=W, stride=s)
        M2 = N * Ho * Wo
        sc2, sh2 = bn_scale_shift(s2, q2, M2, *prep["bn2"])

        # conv3 (1x1): BN2+ReLU fused into the input, BN3 stats fused
        y3, s3, q3 = fused_matmul_stats(y2, prep["w3"], scale=sc2, shift=sh2)
        sc3, sh3 = bn_scale_shift(s3, q3, M2, *prep["bn3"])

        # identity / downsample branch
        if self.downsample_w is not None:
            id2d = x_nhwc[:, ::s, ::s, :].reshape(M2, ip)
            yd, sd, qd = fused_matmul_stats(id2d, prep["wd"])
            scd, shd = bn_scale_shift(sd, qd, M2, *prep["bnd"])
        else:
            assert s == 1 and ip == c3, (
                "identity path requires stride==1 and "
                "inplanes == expansion*planes")
            yd = jnp.pad(x2d, ((0, 0), (0, Pp3 - c3)))
            scd = jnp.ones((Pp3,), jnp.float32)
            shd = jnp.zeros((Pp3,), jnp.float32)

        # BN3-apply + (downsample BN-apply) + residual add + ReLU, one pass
        out2d = bn_residual_relu(y3, sc3, sh3, yd, scd, shd)
        out = out2d[:, :c3].reshape(N, Ho, Wo, c3)
        return jnp.transpose(out, (0, 3, 1, 2)), k


# ----------------------------------------------------------------------------
# Pure-JAX reference (NCHW, lax conv). Mirrors the kernel's precision policy:
# bf16 MXU inputs, f32 accumulation, f32 batch-norm statistics.
# ----------------------------------------------------------------------------
def reference_forward(m, x, k):
    e = m.expansion
    ip = (k + 1) * m.inplanes_per_subnet
    p = (k + 1) * m.planes_per_subnet

    def conv(x, w, stride=1, pad=0):
        return jax.lax.conv_general_dilated(
            x.astype(jnp.bfloat16), w.astype(jnp.bfloat16),
            window_strides=(stride, stride),
            padding=((pad, pad), (pad, pad)),
            dimension_numbers=("NCHW", "OIHW", "NCHW"),
            preferred_element_type=jnp.float32)

    def bn(x, g, b, relu=False):
        mean = x.mean(axis=(0, 2, 3), keepdims=True)
        var = jnp.square(x - mean).mean(axis=(0, 2, 3), keepdims=True)
        y = (x - mean) * jax.lax.rsqrt(var + 1e-5) * g.reshape(1, -1, 1, 1) \
            + b.reshape(1, -1, 1, 1)
        return jnp.maximum(y, 0.0) if relu else y

    identity = x
    out = conv(x, m.conv1_w[:p, :ip])
    out = bn(out, *m.bn1[k], relu=True)
    out = conv(out, m.conv2_w[:p, :p], stride=m.stride, pad=1)
    out = bn(out, *m.bn2[k], relu=True)
    out = conv(out, m.conv3_w[:e * p, :p])
    out = bn(out, *m.bn3[k])
    if m.downsample_w is not None:
        identity = conv(identity, m.downsample_w[:e * p, :ip], stride=m.stride)
        identity = bn(identity, *m.downsample_bn[k])
    return jnp.maximum(out + identity, 0.0)


# ----------------------------------------------------------------------------
if __name__ == "__main__":
    key = jax.random.PRNGKey(0)
    inplanes, planes, num_subnets = 32, 16, 4
    stride, k = 1, 2

    model = AnytimeBottleneckWidthDepthPallas(
        inplanes, planes, num_subnets, stride=stride, downsample=True, key=key)

    inplanes_k = (k + 1) * (inplanes // num_subnets)  # 24 channels for k=2
    x = jax.random.normal(jax.random.PRNGKey(1), (2, inplanes_k, 8, 8),
                          dtype=jnp.float32)

    out, k_out = model.forward(x, k)
    out = jax.block_until_ready(out)

    ref = reference_forward(model, x, k)
    np.testing.assert_allclose(np.asarray(out), np.asarray(ref),
                               rtol=1e-2, atol=1e-2)
    assert out.shape == (2, 4 * (k + 1) * (planes // num_subnets), 8, 8)
    assert k_out == k
    print("KERNEL_OK")
</pallas_src>

<mosaic_0001>
module attributes {stable_mosaic.version = 11 : i64} {
  func.func @_mm_bn_stats_kernel(%arg0: i32, %arg1: memref<128x24xf32, #tpu.memory_space<vmem>>, %arg2: memref<24x128xbf16, #tpu.memory_space<vmem>>, %arg3: memref<128x128xf32, #tpu.memory_space<vmem>>, %arg4: memref<1x128xf32, #tpu.memory_space<vmem>>, %arg5: memref<1x128xf32, #tpu.memory_space<vmem>>) attributes {dimension_semantics = [#tpu.dimension_semantics<arbitrary>], iteration_bounds = array<i64: 1>, scalar_prefetch = 0 : i64, scratch_operands = 0 : i64, tpu.core_type = #tpu.core_type<tc>, window_params = [{transform_indices = @transform_0, window_bounds = array<i64: 128, 24>}, {pipeline_mode = #tpu.pipeline_mode<synchronous>, transform_indices = @transform_1, window_bounds = array<i64: 24, 128>}, {transform_indices = @transform_2, window_bounds = array<i64: 128, 128>}, {pipeline_mode = #tpu.pipeline_mode<synchronous>, transform_indices = @transform_3, window_bounds = array<i64: 1, 128>}, {pipeline_mode = #tpu.pipeline_mode<synchronous>, transform_indices = @transform_4, window_bounds = array<i64: 1, 128>}]} {
    %c0 = arith.constant 0 : index
    %c0_0 = arith.constant 0 : index
    %0 = vector.load %arg1[%c0, %c0_0] : memref<128x24xf32, #tpu.memory_space<vmem>>, vector<128x24xf32>
    %1 = arith.truncf %0 : vector<128x24xf32> to vector<128x24xbf16>
    %c0_1 = arith.constant 0 : index
    %c0_2 = arith.constant 0 : index
    %2 = vector.load %arg2[%c0_1, %c0_2] : memref<24x128xbf16, #tpu.memory_space<vmem>>, vector<24x128xbf16>
    %cst = arith.constant dense<0.000000e+00> : vector<128x128xf32>
    %3 = tpu.matmul %1, %2, %cst {dimension_numbers = #tpu.dot_dimension_numbers<[1], [0], [0], [1], [0, 0, 1, 1], [], []>} : vector<128x24xbf16>, vector<24x128xbf16>, vector<128x128xf32> -> vector<128x128xf32>
    %c0_3 = arith.constant 0 : index
    %c0_4 = arith.constant 0 : index
    %4 = vector.load %arg3[%c0_3, %c0_4] : memref<128x128xf32, #tpu.memory_space<vmem>>, vector<128x128xf32>
    tpu.vector_store %arg3[%c0_3, %c0_4], %3 {strides = array<i32>} : memref<128x128xf32, #tpu.memory_space<vmem>>, vector<128x128xf32>,
    %c0_i32 = arith.constant 0 : i32
    %5 = arith.cmpi eq, %arg0, %c0_i32 : i32
    %6 = arith.extui %5 : i1 to i32
    %c0_i32_5 = arith.constant 0 : i32
    %7 = arith.cmpi ne, %6, %c0_i32_5 : i32
    scf.if %7 {
      %cst_16 = arith.constant 0.000000e+00 : f32
      %19 = vector.broadcast %cst_16 : f32 to vector<1x128xf32>
      %c0_17 = arith.constant 0 : index
      %c0_18 = arith.constant 0 : index
      %20 = vector.load %arg4[%c0_17, %c0_18] : memref<1x128xf32, #tpu.memory_space<vmem>>, vector<1x128xf32>
      tpu.vector_store %arg4[%c0_17, %c0_18], %19 {strides = array<i32>} : memref<1x128xf32, #tpu.memory_space<vmem>>, vector<1x128xf32>,
      %cst_19 = arith.constant 0.000000e+00 : f32
      %21 = vector.broadcast %cst_19 : f32 to vector<1x128xf32>
      %c0_20 = arith.constant 0 : index
      %c0_21 = arith.constant 0 : index
      %22 = vector.load %arg5[%c0_20, %c0_21] : memref<1x128xf32, #tpu.memory_space<vmem>>, vector<1x128xf32>
      tpu.vector_store %arg5[%c0_20, %c0_21], %21 {strides = array<i32>} : memref<1x128xf32, #tpu.memory_space<vmem>>, vector<1x128xf32>,
    } else {
    }
    %c0_6 = arith.constant 0 : index
    %c0_7 = arith.constant 0 : index
    %8 = vector.load %arg4[%c0_6, %c0_7] : memref<1x128xf32, #tpu.memory_space<vmem>>, vector<1x128xf32>
    %cst_8 = arith.constant dense<0.000000e+00> : vector<128xf32>
    %9 = vector.multi_reduction <add>, %3, %cst_8 [0] : vector<128x128xf32> to vector<128xf32>
    %10 = vector.shape_cast %9 : vector<128xf32> to vector<1x128xf32>
    %11 = arith.addf %8, %10 : vector<1x128xf32>
    %c0_9 = arith.constant 0 : index
    %c0_10 = arith.constant 0 : index
    %12 = vector.load %arg4[%c0_9, %c0_10] : memref<1x128xf32, #tpu.memory_space<vmem>>, vector<1x128xf32>
    tpu.vector_store %arg4[%c0_9, %c0_10], %11 {strides = array<i32>} : memref<1x128xf32, #tpu.memory_space<vmem>>, vector<1x128xf32>,
    %c0_11 = arith.constant 0 : index
    %c0_12 = arith.constant 0 : index
    %13 = vector.load %arg5[%c0_11, %c0_12] : memref<1x128xf32, #tpu.memory_space<vmem>>, vector<1x128xf32>
    %14 = arith.mulf %3, %3 : vector<128x128xf32>
    %cst_13 = arith.constant dense<0.000000e+00> : vector<128xf32>
    %15 = vector.multi_reduction <add>, %14, %cst_13 [0] : vector<128x128xf32> to vector<128xf32>
    %16 = vector.shape_cast %15 : vector<128xf32> to vector<1x128xf32>
    %17 = arith.addf %13, %16 : vector<1x128xf32>
    %c0_14 = arith.constant 0 : index
    %c0_15 = arith.constant 0 : index
    %18 = vector.load %arg5[%c0_14, %c0_15] : memref<1x128xf32, #tpu.memory_space<vmem>>, vector<1x128xf32>
    tpu.vector_store %arg5[%c0_14, %c0_15], %17 {strides = array<i32>} : memref<1x128xf32, #tpu.memory_space<vmem>>, vector<1x128xf32>,
    return
  }
  func.func @transform_0(%arg0: i32) -> (i32, i32) {
    %c0_i32 = arith.constant 0 : i32
    %c0_i32_0 = arith.constant 0 : i32
    return %arg0, %c0_i32 : i32, i32
  }
  func.func @transform_1(%arg0: i32) -> (i32, i32) {
    %c0_i32 = arith.constant 0 : i32
    %c0_i32_0 = arith.constant 0 : i32
    %c0_i32_1 = arith.constant 0 : i32
    return %c0_i32, %c0_i32_0 : i32, i32
  }
  func.func @transform_2(%arg0: i32) -> (i32, i32) {
    %c0_i32 = arith.constant 0 : i32
    %c0_i32_0 = arith.constant 0 : i32
    return %arg0, %c0_i32 : i32, i32
  }
  func.func @transform_3(%arg0: i32) -> (i32, i32) {
    %c0_i32 = arith.constant 0 : i32
    %c0_i32_0 = arith.constant 0 : i32
    %c0_i32_1 = arith.constant 0 : i32
    return %c0_i32, %c0_i32_0 : i32, i32
  }
  func.func @transform_4(%arg0: i32) -> (i32, i32) {
    %c0_i32 = arith.constant 0 : i32
    %c0_i32_0 = arith.constant 0 : i32
    %c0_i32_1 = arith.constant 0 : i32
    return %c0_i32, %c0_i32_0 : i32, i32
  }
}

</mosaic_0001>

<llo_original>
// kernel: tpu_custom_call.1
$region0: #{tpu_custom_call.1}
  #allocation0 [shape = 'u32[]', space=smem, size = 0x4, offset = 0x4, fixed_abs, tag = 'smem constant byte address 0x4 - core index']
  #allocation1 [shape = 'u32[144,128]{1,0:T(1,128)}', space=vmem, size = 0x12000, scoped, tag = 'internal scratch']
  %s0 = inlined_call_operand.vmem [shape: f32[128,24], index: 0, kind: input, shape index: {}]
  %s1 = inlined_call_operand.vmem [shape: bf16[24,128], index: 1, kind: input, shape index: {}]
  %s2 = inlined_call_operand.hbm [shape: f32[128,128], index: 2, kind: output, shape index: {0}]
  %s3 = inlined_call_operand.hbm [shape: f32[1,128], index: 3, kind: output, shape index: {1}]
  %s4 = inlined_call_operand.hbm [shape: f32[1,128], index: 4, kind: output, shape index: {2}]
  %5 = xla_tuple %s2, %s3, %s4
  %s6 = sld [smem:[#allocation0]]
  $region38: #{tpu_custom_call.1} parent=0
    _
  %s8 = ssub.s32 1, %s6
  %s9 = scalar_select 0, %s8, %s6
  $region1: #{tpu_custom_call.1} parent=0
    #allocation2 [shape = 'u8[65536]{0}', space=vmem, size = 0x10000, scoped, tag = 'output window, operand 0, single buffered']
    #allocation3 [shape = 's32[1]{0}', space=sflag, size = 0x4, scoped, tag = 'scoped memory for tpu_custom_call.1']
    #allocation4 [shape = 'u8[512]{0}', space=vmem, size = 0x400, scoped, tag = 'output window, operand 1, single buffered']
    #allocation5 [shape = 's32[1]{0}', space=sflag, size = 0x4, scoped, tag = 'scoped memory for tpu_custom_call.1']
    #allocation6 [shape = 'u8[512]{0}', space=vmem, size = 0x400, scoped, tag = 'output window, operand 2, single buffered']
    %10 = vsyncpa [#allocation3], 0
    %11 = vsyncpa [#allocation5], 0
    // Predicated region
    $region2: #{tpu_custom_call.1} parent=1 // pred_check
      _
    $region3: #{tpu_custom_call.1} parent=1 // pred_check_branch
      %13 = sbr.rel (0) target = $region5
    $region4: #{tpu_custom_call.1} parent=1 // pred_region
      _
    $region5: #{tpu_custom_call.1} parent=1 // pred_fallthru
      _
    // Predicated region
    $region6: #{tpu_custom_call.1} parent=1 // pred_check
      _
    $region7: #{tpu_custom_call.1} parent=1 // pred_check_branch
      %15 = sbr.rel (0) target = $region9
    $region8: #{tpu_custom_call.1} parent=1 // pred_region
      _
    $region9: #{tpu_custom_call.1} parent=1 // pred_fallthru
      _
    %v17 = vld [vmem:[%s0] sm:$0xff]
    %v18 = vld [vmem:[%s0 + $0x8] sm:$0xff]
    %v19 = vld [vmem:[%s0 + $0x10] sm:$0xff]
    %v20 = vld [vmem:[%s0 + $0x18] sm:$0xff]
    %v21 = vld [vmem:[%s0 + $0x20] sm:$0xff]
    %v22 = vld [vmem:[%s0 + $0x28] sm:$0xff]
    %v23 = vld [vmem:[%s0 + $0x30] sm:$0xff]
    %v24 = vld [vmem:[%s0 + $0x38] sm:$0xff]
    %v25 = vld [vmem:[%s0 + $0x40] sm:$0xff]
    %v26 = vld [vmem:[%s0 + $0x48] sm:$0xff]
    %v27 = vld [vmem:[%s0 + $0x50] sm:$0xff]
    %v28 = vld [vmem:[%s0 + $0x58] sm:$0xff]
    %v29 = vld [vmem:[%s0 + $0x60] sm:$0xff]
    %v30 = vld [vmem:[%s0 + $0x68] sm:$0xff]
    %v31 = vld [vmem:[%s0 + $0x70] sm:$0xff]
    %v32 = vld [vmem:[%s0 + $0x78] sm:$0xff]
    %v33 = vpack.c.bf16 %v18, %v17
    %v34 = vpack.c.bf16 %v20, %v19
    %v35 = vpack.c.bf16 %v22, %v21
    %v36 = vpack.c.bf16 %v24, %v23
    %v37 = vpack.c.bf16 %v26, %v25
    %v38 = vpack.c.bf16 %v28, %v27
    %v39 = vpack.c.bf16 %v30, %v29
    %v40 = vpack.c.bf16 %v32, %v31
    %v41 = vld [vmem:[%s1] sm:$0xf]
    %v42 = vld [vmem:[%s1 + $0x4] sm:$0xf]
    %v43 = vld [vmem:[%s1 + $0x8] sm:$0xf]
    %v47 = vunpack.c.l.b16 %v41
    %v48 = vunpack.c.l.b16 %v42
    %v49 = vunpack.c.l.b16 %v43
    %v50 = vpack.c.b16 %v48, %v47
    %v51 = vpack.c.b16 %v49, %v49
    %vm53 = vcmask 195584
    %v55 = vsel %vm53, %v33, 0
    %v58 = vsel %vm53, %v34, 0
    %v61 = vsel %vm53, %v35, 0
    %v64 = vsel %vm53, %v36, 0
    %v67 = vsel %vm53, %v37, 0
    %v70 = vsel %vm53, %v38, 0
    %v73 = vsel %vm53, %v39, 0
    %v76 = vsel %vm53, %v40, 0
    %vm78 = vcmask 1043456
    %v80 = vsel %vm78, %v51, 0
    %82 = vmatprep.subr.bf16.mxu0 0
    %83 = vmatpush1.bf16.msra.mxu0 %v50
    %84 = vmatprep.subr.bf16.mxu0 0
    %85 = vmatpush1.bf16.msra.mxu0 %v80
    %86 = vmatprep.subr.bf16.mxu0 0
    %87 = vmatpush1.bf16.msra.mxu0 0
    %88 = vmatprep.subr.bf16.mxu0 0
    %89 = vmatpush1.bf16.msra.mxu0 0
    %90 = vmatprep.subr.bf16.mxu0 0
    %91 = vmatpush1.bf16.msra.mxu0 0
    %92 = vmatprep.subr.bf16.mxu0 0
    %93 = vmatpush1.bf16.msra.mxu0 0
    %94 = vmatprep.subr.bf16.mxu0 0
    %95 = vmatpush1.bf16.msra.mxu0 0
    %96 = vmatprep.subr.bf16.mxu0 0
    %97 = vmatpush1.bf16.msra.mxu0 0
    %98 = vmatprep.subr.bf16.mxu0 0
    %99 = vmatpush1.bf16.msra.mxu0 0
    %100 = vmatprep.subr.bf16.mxu0 0
    %101 = vmatpush1.bf16.msra.mxu0 0
    %102 = vmatprep.subr.bf16.mxu0 0
    %103 = vmatpush1.bf16.msra.mxu0 0
    %104 = vmatprep.subr.bf16.mxu0 0
    %105 = vmatpush1.bf16.msra.mxu0 0
    %106 = vmatprep.subr.bf16.mxu0 0
    %107 = vmatpush1.bf16.msra.mxu0 0
    %108 = vmatprep.subr.bf16.mxu0 0
    %109 = vmatpush1.bf16.msra.mxu0 0
    %110 = vmatprep.subr.bf16.mxu0 0
    %111 = vmatpush1.bf16.msra.mxu0 0
    %112 = vmatprep.subr.bf16.mxu0 0
    %113 = vmatpush1.bf16.msra.mxu0 0
    %114 = vmatprep.mubr.bf16.mxu0 0
    %115 = vmatmul.mubr.bf16.gmra.mrb[0].mxu0 %v55
    %v116 = vpop.f32.mrb[0].mxu0
    %v117 = vadd.f32 0.0, %v116
    %v118 = vpop.f32.mrb[0].mxu0
    %v119 = vpop.f32.mrb[0].mxu0
    %v120 = vadd.f32 0.0, %v119
    %v121 = vpop.f32.mrb[0].mxu0
    %122 = vmatprep.mubr.bf16.mxu0 0
    %123 = vmatmul.mubr.bf16.gmra.mrb[0].mxu0 %v58
    %v124 = vpop.f32.mrb[0].mxu0
    %v125 = vadd.f32 0.0, %v124
    %v126 = vpop.f32.mrb[0].mxu0
    %v127 = vpop.f32.mrb[0].mxu0
    %v128 = vadd.f32 0.0, %v127
    %v129 = vpop.f32.mrb[0].mxu0
    %130 = vmatprep.mubr.bf16.mxu0 0
    %131 = vmatmul.mubr.bf16.gmra.mrb[0].mxu0 %v61
    %v132 = vpop.f32.mrb[0].mxu0
    %v133 = vadd.f32 0.0, %v132
    %v134 = vpop.f32.mrb[0].mxu0
    %v135 = vpop.f32.mrb[0].mxu0
    %v136 = vadd.f32 0.0, %v135
    %v137 = vpop.f32.mrb[0].mxu0
    %138 = vmatprep.mubr.bf16.mxu0 0
    %139 = vmatmul.mubr.bf16.gmra.mrb[0].mxu0 %v64
    %v140 = vpop.f32.mrb[0].mxu0
    %v141 = vadd.f32 0.0, %v140
    %v142 = vpop.f32.mrb[0].mxu0
    %v143 = vpop.f32.mrb[0].mxu0
    %v144 = vadd.f32 0.0, %v143
    %v145 = vpop.f32.mrb[0].mxu0
    %146 = vmatprep.mubr.bf16.mxu0 0
    %147 = vmatmul.mubr.bf16.gmra.mrb[0].mxu0 %v67
    %v148 = vpop.f32.mrb[0].mxu0
    %v149 = vadd.f32 0.0, %v148
    %v150 = vpop.f32.mrb[0].mxu0
    %v151 = vpop.f32.mrb[0].mxu0
    %v152 = vadd.f32 0.0, %v151
    %v153 = vpop.f32.mrb[0].mxu0
    %154 = vmatprep.mubr.bf16.mxu0 0
    %155 = vmatmul.mubr.bf16.gmra.mrb[0].mxu0 %v70
    %v156 = vpop.f32.mrb[0].mxu0
    %v157 = vadd.f32 0.0, %v156
    %v158 = vpop.f32.mrb[0].mxu0
    %v159 = vpop.f32.mrb[0].mxu0
    %v160 = vadd.f32 0.0, %v159
    %v161 = vpop.f32.mrb[0].mxu0
    %162 = vmatprep.mubr.bf16.mxu0 0
    %163 = vmatmul.mubr.bf16.gmra.mrb[0].mxu0 %v73
    %v164 = vpop.f32.mrb[0].mxu0
    %v165 = vadd.f32 0.0, %v164
    %v166 = vpop.f32.mrb[0].mxu0
    %v167 = vpop.f32.mrb[0].mxu0
    %v168 = vadd.f32 0.0, %v167
    %v169 = vpop.f32.mrb[0].mxu0
    %170 = vmatprep.mubr.bf16.mxu0 0
    %171 = vmatmul.mubr.bf16.gmra.mrb[0].mxu0 %v76
    %v172 = vpop.f32.mrb[0].mxu0
    %v173 = vadd.f32 0.0, %v172
    %v174 = vpop.f32.mrb[0].mxu0
    %v175 = vpop.f32.mrb[0].mxu0
    %v176 = vadd.f32 0.0, %v175
    %v177 = vpop.f32.mrb[0].mxu0
    %178 = vdwg.mxu0
    %179 = vst [vmem:[#allocation2] sm:$0xff] %v117
    %180 = vst [vmem:[#allocation2 + $0x8] sm:$0xff] %v120
    %181 = vst [vmem:[#allocation2 + $0x10] sm:$0xff] %v125
    %182 = vst [vmem:[#allocation2 + $0x18] sm:$0xff] %v128
    %183 = vst [vmem:[#allocation2 + $0x20] sm:$0xff] %v133
    %184 = vst [vmem:[#allocation2 + $0x28] sm:$0xff] %v136
    %185 = vst [vmem:[#allocation2 + $0x30] sm:$0xff] %v141
    %186 = vst [vmem:[#allocation2 + $0x38] sm:$0xff] %v144
    %187 = vst [vmem:[#allocation2 + $0x40] sm:$0xff] %v149
    %188 = vst [vmem:[#allocation2 + $0x48] sm:$0xff] %v152
    %189 = vst [vmem:[#allocation2 + $0x50] sm:$0xff] %v157
    %190 = vst [vmem:[#allocation2 + $0x58] sm:$0xff] %v160
    %191 = vst [vmem:[#allocation2 + $0x60] sm:$0xff] %v165
    %192 = vst [vmem:[#allocation2 + $0x68] sm:$0xff] %v168
    %193 = vst [vmem:[#allocation2 + $0x70] sm:$0xff] %v173
    %194 = vst [vmem:[#allocation2 + $0x78] sm:$0xff] %v176
    %p195 = scmp.eq.s32.totalorder 0, 0
    // Predicated region
    $region10: #{tpu_custom_call.1} parent=1 // pred_check
      %p196 = pneg %p195
    $region11: #{tpu_custom_call.1} parent=1 // pred_check_branch
      %198 = sbr.rel (%p196) target = $region13
    $region12: #{tpu_custom_call.1} parent=1 // pred_region
      %199 = vst [vmem:[#allocation4] sm:$0x1] 0.0
      %200 = vst [vmem:[#allocation6] sm:$0x1] 0.0
    $region13: #{tpu_custom_call.1} parent=1 // pred_fallthru
      _
    %v201 = vld [vmem:[#allocation4] sm:$0x1]
    %v202 = vadd.f32 %v117, %v120
    %v203 = vadd.f32 %v202, %v125
    %v204 = vadd.f32 %v203, %v128
    %v205 = vadd.f32 %v204, %v133
    %v206 = vadd.f32 %v205, %v136
    %v207 = vadd.f32 %v206, %v141
    %v208 = vadd.f32 %v207, %v144
    %v209 = vadd.f32 %v208, %v149
    %v210 = vadd.f32 %v209, %v152
    %v211 = vadd.f32 %v210, %v157
    %v212 = vadd.f32 %v211, %v160
    %v213 = vadd.f32 %v212, %v165
    %v214 = vadd.f32 %v213, %v168
    %v215 = vadd.f32 %v214, %v173
    %v216 = vadd.f32 %v215, %v176
    %v217 = vrot.slane %v216, 4
    %v218 = vadd.f32 %v216, %v217
    %v219 = vrot.slane %v218, 2
    %v220 = vadd.f32 %v218, %v219
    %v221 = vrot.slane %v220, 1
    %v222 = vadd.f32 %v220, %v221
    %v223 = vadd.f32 %v201, %v222
    %224 = vst [vmem:[#allocation4] sm:$0x1] %v223
    %v225 = vld [vmem:[#allocation6] sm:$0x1]
    %v226 = vmul.f32 %v117, %v117
    %v227 = vmul.f32 %v120, %v120
    %v228 = vmul.f32 %v125, %v125
    %v229 = vmul.f32 %v128, %v128
    %v230 = vmul.f32 %v133, %v133
    %v231 = vmul.f32 %v136, %v136
    %v232 = vmul.f32 %v141, %v141
    %v233 = vmul.f32 %v144, %v144
    %v234 = vmul.f32 %v149, %v149
    %v235 = vmul.f32 %v152, %v152
    %v236 = vmul.f32 %v157, %v157
    %v237 = vmul.f32 %v160, %v160
    %v238 = vmul.f32 %v165, %v165
    %v239 = vmul.f32 %v168, %v168
    %v240 = vmul.f32 %v173, %v173
    %v241 = vmul.f32 %v176, %v176
    %v242 = vadd.f32 %v226, %v227
    %v243 = vadd.f32 %v242, %v228
    %v244 = vadd.f32 %v243, %v229
    %v245 = vadd.f32 %v244, %v230
    %v246 = vadd.f32 %v245, %v231
    %v247 = vadd.f32 %v246, %v232
    %v248 = vadd.f32 %v247, %v233
    %v249 = vadd.f32 %v248, %v234
    %v250 = vadd.f32 %v249, %v235
    %v251 = vadd.f32 %v250, %v236
    %v252 = vadd.f32 %v251, %v237
    %v253 = vadd.f32 %v252, %v238
    %v254 = vadd.f32 %v253, %v239
    %v255 = vadd.f32 %v254, %v240
    %v256 = vadd.f32 %v255, %v241
    %v257 = vrot.slane %v256, 4
    %v258 = vadd.f32 %v256, %v257
    %v259 = vrot.slane %v258, 2
    %v260 = vadd.f32 %v258, %v259
    %v261 = vrot.slane %v260, 1
    %v262 = vadd.f32 %v260, %v261
    %v263 = vadd.f32 %v225, %v262
    %264 = vst [vmem:[#allocation6] sm:$0x1] %v263
    // Predicated region
    $region14: #{tpu_custom_call.1} parent=1 // pred_check
      _
    $region15: #{tpu_custom_call.1} parent=1 // pred_check_branch
      %266 = sbr.rel (0) target = $region17
    $region16: #{tpu_custom_call.1} parent=1 // pred_region
      %s268 = ssub.s32 2048, 2048
      %269 = vsyncadd [#allocation3], %s268
      %s270 = sshll.u32 [#allocation2], 4
      %s271 = int_to_ptr.vmem [resolvable:$true] %s270
      %276 = dma.vmem_to_hbm [thread:$0]  %s271, 2048, %s2, [#allocation3], 128, 128, 8
    $region17: #{tpu_custom_call.1} parent=1 // pred_fallthru
      _
    // Predicated region
    $region18: #{tpu_custom_call.1} parent=1 // pred_check
      _
    $region19: #{tpu_custom_call.1} parent=1 // pred_check_branch
      %278 = sbr.rel (0) target = $region21
    $region20: #{tpu_custom_call.1} parent=1 // pred_region
      %s280 = ssub.s32 16, 16
      %281 = vsyncadd [#allocation5], %s280
      %s283 = sshll.u32 [#allocation4], 4
      %s284 = int_to_ptr.vmem [resolvable:$true] %s283
      %286 = dma.vmem_to_hbm [thread:$0]  %s284, 16, %s3, [#allocation5]
    $region21: #{tpu_custom_call.1} parent=1 // pred_fallthru
      _
    // Predicated region
    $region22: #{tpu_custom_call.1} parent=1 // pred_check
      _
    $region23: #{tpu_custom_call.1} parent=1 // pred_check_branch
      %288 = sbr.rel (0) target = $region25
    $region24: #{tpu_custom_call.1} parent=1 // pred_region
      %s290 = ssub.s32 16, 16
      %291 = vsyncadd [#allocation5], %s290
      %s293 = sshll.u32 [#allocation6], 4
      %s294 = int_to_ptr.vmem [resolvable:$true] %s293
      %296 = dma.vmem_to_hbm [thread:$0]  %s294, 16, %s4, [#allocation5]
    $region25: #{tpu_custom_call.1} parent=1 // pred_fallthru
      _
    // Predicated region
    $region26: #{tpu_custom_call.1} parent=1 // pred_check
      _
    $region27: #{tpu_custom_call.1} parent=1 // pred_check_branch
      %298 = sbr.rel (0) target = $region29
    $region28: #{tpu_custom_call.1} parent=1 // pred_region
      %299 = dma.done [#allocation3], 2048
    $region29: #{tpu_custom_call.1} parent=1 // pred_fallthru
      _
    // Predicated region
    $region30: #{tpu_custom_call.1} parent=1 // pred_check
      _
    $region31: #{tpu_custom_call.1} parent=1 // pred_check_branch
      %301 = sbr.rel (0) target = $region33
    $region32: #{tpu_custom_call.1} parent=1 // pred_region
      %302 = dma.done [#allocation5], 16
    $region33: #{tpu_custom_call.1} parent=1 // pred_fallthru
      _
    // Predicated region
    $region34: #{tpu_custom_call.1} parent=1 // pred_check
      _
    $region35: #{tpu_custom_call.1} parent=1 // pred_check_branch
      %304 = sbr.rel (0) target = $region37
    $region36: #{tpu_custom_call.1} parent=1 // pred_region
      %305 = dma.done [#allocation5], 16
    $region37: #{tpu_custom_call.1} parent=1 // pred_fallthru
      _
    %306 = vsyncpa [#allocation3], 1
    %307 = vsyncpa [#allocation5], 1

</llo_original>
